<compile_context>
chip_gen: v5e
topology: v5e:2x2
jax: 0.10.0
libtpu: 0.0.40
codegen_flags: <defaults>
</compile_context>

<pallas_src>
import functools

import jax
import jax.numpy as jnp
from jax.experimental import pallas as pl
from jax.experimental.pallas import tpu as pltpu

H1 = 128  # fc1 fan-out (also packed row/lane width)
H2 = 64   # fc2 fan-out


def _round_up(x, m):
    return (x + m - 1) // m * m


def _dqn_kernel(x_ref, w_ref, b_ref, *out_refs, state_size, action_size,
                with_action):
    q_ref = out_refs[0]
    x = x_ref[...]                                                # [TB, S] bf16
    # fc1 + ReLU: only the first S rows of the padded W1 block are real.
    h = jnp.dot(x, w_ref[0, :state_size, :],
                preferred_element_type=jnp.float32)               # [TB, 128]
    h = jnp.maximum(h + b_ref[0], 0.0)
    # fc2 + ReLU: padded columns (>= 64) of W2 / b2 are zero -> stay exactly 0.
    h = jnp.dot(h.astype(jnp.bfloat16), w_ref[1],
                preferred_element_type=jnp.float32)               # [TB, 128]
    h = jnp.maximum(h + b_ref[1], 0.0)
    # out: padded rows (>= 64) of W3 are zero -> contribute nothing.
    q = jnp.dot(h.astype(jnp.bfloat16), w_ref[2],
                preferred_element_type=jnp.float32) + b_ref[2]    # [TB, 128]
    q_ref[...] = q[:, :action_size].astype(q_ref.dtype)

    if with_action:
        # Fused greedy action (argmax over real lanes, first-max tie-break).
        a_ref = out_refs[1]
        lane = jax.lax.broadcasted_iota(jnp.int32, q.shape, 1)
        qm = jnp.where(lane < action_size, q, jnp.float32(-jnp.inf))
        qmax = jnp.max(qm, axis=-1, keepdims=True)
        idx = jnp.where(qm == qmax, lane.astype(jnp.float32), jnp.float32(H1))
        a_ref[...] = jnp.min(idx, axis=-1, keepdims=True).astype(jnp.int32)


def pack_params(params):
    """Pack (w1,b1,w2,b2,w3,b3) -> W_pack[3,128,128] bf16, b_pack[3,1,128] f32.

    Call ONCE per model (outside the acting/forward loop) and pass the packed
    tensors to dqn_forward — no packing ops remain in the per-call hot path.
    """
    w1, b1, w2, b2, w3, b3 = params
    S = w1.shape[0]
    A = w3.shape[1]
    assert S <= 128, "packed layout requires state_size <= 128"
    assert A <= 128, "action_size must fit in one 128-lane tile"
    wp = jnp.zeros((3, H1, H1), jnp.bfloat16)
    wp = wp.at[0, :S, :H1].set(w1.astype(jnp.bfloat16))
    wp = wp.at[1, :H1, :H2].set(w2.astype(jnp.bfloat16))
    wp = wp.at[2, :H2, :A].set(w3.astype(jnp.bfloat16))
    bp = jnp.zeros((3, 1, H1), jnp.float32)
    bp = bp.at[0, 0, :H1].set(b1.reshape(-1).astype(jnp.float32))
    bp = bp.at[1, 0, :H2].set(b2.reshape(-1).astype(jnp.float32))
    bp = bp.at[2, 0, :A].set(b3.reshape(-1).astype(jnp.float32))
    return wp, bp


def _vmem_limit_bytes(tb, with_action):
    """Lane-padded VMEM budget for one batch tile (double-buffered I/O)."""
    x_blk = 2 * tb * 128 * 2          # bf16 x block, 2 buffers
    q_blk = 2 * tb * 128 * 4          # f32 q block, 2 buffers (lane-padded)
    a_blk = 2 * tb * 128 * 4 if with_action else 0
    interm = 3 * tb * 128 * 4         # h1, h2, q f32 intermediates
    weights = 2 * (3 * 128 * 128 * 2 + 3 * 128 * 4)
    est = x_blk + q_blk + a_blk + interm + weights
    # >= v5e's 16 MiB default scoped, <= safe ceiling for v7x's 64 MiB physical
    return min(48 << 20, max(16 << 20, int(1.5 * est) + (4 << 20)))


@functools.partial(jax.jit,
                   static_argnames=("action_size", "block_b", "return_action"))
def dqn_forward(x, wp, bp, *, action_size, block_b=2048, return_action=False):
    B, S = x.shape
    assert S <= 128, "packed layout requires state_size <= 128"
    A = action_size

    x = x.astype(jnp.bfloat16)  # x is the only B-scaled HBM stream -> bf16

    # Batch tile: multiple of 8 sublanes, capped by block_b, and capped at
    # ceil(B/2) so the parallel grid has >= 2 steps for v7x's two TCs.
    TB = max(8, min(_round_up(block_b, 8), _round_up(pl.cdiv(B, 2), 8)))
    grid = pl.cdiv(B, TB)  # partial last block handled by Pallas (no jnp.pad)

    kernel = functools.partial(_dqn_kernel, state_size=S, action_size=A,
                               with_action=return_action)

    q_shape = jax.ShapeDtypeStruct((B, A), jnp.float32)
    q_spec = pl.BlockSpec((TB, A), lambda i: (i, 0))
    if return_action:
        out_shape = (q_shape, jax.ShapeDtypeStruct((B, 1), jnp.int32))
        out_specs = (q_spec, pl.BlockSpec((TB, 1), lambda i: (i, 0)))
    else:
        out_shape = q_shape
        out_specs = q_spec

    flops = 2 * B * (S * H1 + H1 * H2 + H2 * A)
    bytes_accessed = (2 * B * S + 2 * wp.size + 4 * bp.size + 4 * B * A
                      + (4 * B if return_action else 0))

    out = pl.pallas_call(
        kernel,
        out_shape=out_shape,
        grid_spec=pltpu.PrefetchScalarGridSpec(
            num_scalar_prefetch=0,
            grid=(grid,),
            in_specs=[
                pl.BlockSpec((TB, S), lambda i: (i, 0)),       # streams w/ grid
                pl.BlockSpec(wp.shape, lambda i: (0, 0, 0)),   # VMEM-resident
                pl.BlockSpec(bp.shape, lambda i: (0, 0, 0)),   # VMEM-resident
            ],
            out_specs=out_specs,
        ),
        compiler_params=pltpu.CompilerParams(
            dimension_semantics=("parallel",),
            vmem_limit_bytes=_vmem_limit_bytes(TB, return_action)),
        cost_estimate=pl.CostEstimate(
            flops=flops, transcendentals=0, bytes_accessed=bytes_accessed),
    )(x, wp, bp)

    if return_action:
        q, a = out
        return q, a[:, 0]
    return out


def init_params(key, state_size, action_size):
    """Deterministic synthetic init (PyTorch-like uniform fan-in scaling)."""
    def linear(k, fan_in, fan_out):
        kw, kb = jax.random.split(k)
        bound = 1.0 / jnp.sqrt(fan_in)
        w = jax.random.uniform(kw, (fan_in, fan_out), jnp.float32, -bound, bound)
        b = jax.random.uniform(kb, (1, fan_out), jnp.float32, -bound, bound)
        return w, b

    k1, k2, k3 = jax.random.split(key, 3)
    w1, b1 = linear(k1, state_size, H1)
    w2, b2 = linear(k2, H1, H2)
    w3, b3 = linear(k3, H2, action_size)
    return (w1, b1, w2, b2, w3, b3)


def reference_forward(x, params):
    """Pure-f32 JAX reference (module semantics)."""
    w1, b1, w2, b2, w3, b3 = params
    h = jnp.maximum(x @ w1 + b1, 0.0)
    h = jnp.maximum(h @ w2 + b2, 0.0)
    return h @ w3 + b3


def reference_forward_bf16(x, params):
    """Reference that mirrors the kernel's precision (bf16 matmul operands,
    f32 accumulate / bias / ReLU)."""
    w1, b1, w2, b2, w3, b3 = params
    f = lambda a: a.astype(jnp.bfloat16).astype(jnp.float32)
    h = jnp.maximum(jnp.dot(f(x), f(w1)) + b1, 0.0)
    h = jnp.maximum(jnp.dot(f(h), f(w2)) + b2, 0.0)
    return jnp.dot(f(h), f(w3)) + b3


if __name__ == "__main__":
    key = jax.random.PRNGKey(0)
    kx, kp = jax.random.split(key)

    state_size = 16
    action_size = 4
    params = init_params(kp, state_size, action_size)
    wp, bp = pack_params(params)  # packed ONCE, outside the hot path

    # Small single-tile check (B=8 -> grid=(1,)).
    x_small = jax.random.normal(kx, (8, state_size), jnp.float32)
    q_small = jax.block_until_ready(
        dqn_forward(x_small, wp, bp, action_size=action_size))
    assert q_small.shape == (8, action_size)
    assert jnp.allclose(q_small, reference_forward_bf16(x_small, params),
                        atol=2e-2, rtol=2e-2)

    # Batched check: multi-step grid, partial last tile handled without any
    # jnp.pad of x, weights resident across steps (B=200, TB=64 -> grid=(4,)).
    x_big = jax.random.normal(kx, (200, state_size), jnp.float32)
    q_big = jax.block_until_ready(
        dqn_forward(x_big, wp, bp, action_size=action_size, block_b=64))
    assert q_big.shape == (200, action_size)
    assert jnp.allclose(q_big, reference_forward_bf16(x_big, params),
                        atol=2e-2, rtol=2e-2)
    assert jnp.allclose(q_big, reference_forward(x_big, params),
                        atol=1e-1, rtol=1e-1)

    # Fused greedy-action (acting path) check: default block_b, TB=ceil(B/2)
    # so the parallel grid still has 2 steps.
    q_act, act = dqn_forward(x_big, wp, bp, action_size=action_size,
                             return_action=True)
    jax.block_until_ready((q_act, act))
    assert act.shape == (200,)
    assert jnp.array_equal(act, jnp.argmax(q_act, axis=-1).astype(jnp.int32))
    assert jnp.allclose(q_act, reference_forward_bf16(x_big, params),
                        atol=2e-2, rtol=2e-2)

    # TODO(synk): epsilon-greedy exploration (pltpu.prng_random_bits) could be
    # fused here too; kept out to preserve the module's forward semantics.
    print("KERNEL_OK")
</pallas_src>

<mosaic_0001>
module attributes {stable_mosaic.version = 11 : i64} {
  func.func @_dqn_kernel(%arg0: i32, %arg1: memref<8x16xbf16, #tpu.memory_space<vmem>>, %arg2: memref<3x128x128xbf16, #tpu.memory_space<vmem>>, %arg3: memref<3x1x128xf32, #tpu.memory_space<vmem>>, %arg4: memref<8x4xf32, #tpu.memory_space<vmem>>) attributes {dimension_semantics = [#tpu.dimension_semantics<parallel>], iteration_bounds = array<i64: 1>, scalar_prefetch = 0 : i64, scratch_operands = 0 : i64, tpu.core_type = #tpu.core_type<tc>, window_params = [{transform_indices = @transform_0, window_bounds = array<i64: 8, 16>}, {pipeline_mode = #tpu.pipeline_mode<synchronous>, transform_indices = @transform_1, window_bounds = array<i64: 3, 128, 128>}, {pipeline_mode = #tpu.pipeline_mode<synchronous>, transform_indices = @transform_2, window_bounds = array<i64: 3, 1, 128>}, {transform_indices = @transform_3, window_bounds = array<i64: 8, 4>}]} {
    %c0 = arith.constant 0 : index
    %c0_0 = arith.constant 0 : index
    %0 = vector.load %arg1[%c0, %c0_0] : memref<8x16xbf16, #tpu.memory_space<vmem>>, vector<8x16xbf16>
    %c0_1 = arith.constant 0 : index
    %c0_2 = arith.constant 0 : index
    %c0_3 = arith.constant 0 : index
    %1 = vector.load %arg2[%c0_1, %c0_2, %c0_3] : memref<3x128x128xbf16, #tpu.memory_space<vmem>>, vector<1x16x128xbf16>
    %2 = vector.shape_cast %1 : vector<1x16x128xbf16> to vector<16x128xbf16>
    %cst = arith.constant dense<0.000000e+00> : vector<8x128xf32>
    %3 = tpu.matmul %0, %2, %cst {dimension_numbers = #tpu.dot_dimension_numbers<[1], [0], [0], [1], [0, 0, 1, 1], [], []>} : vector<8x16xbf16>, vector<16x128xbf16>, vector<8x128xf32> -> vector<8x128xf32>
    %c0_4 = arith.constant 0 : index
    %c0_5 = arith.constant 0 : index
    %c0_6 = arith.constant 0 : index
    %4 = vector.load %arg3[%c0_4, %c0_5, %c0_6] : memref<3x1x128xf32, #tpu.memory_space<vmem>>, vector<1x1x128xf32>
    %5 = vector.shape_cast %4 : vector<1x1x128xf32> to vector<1x128xf32>
    %6 = vector.broadcast %5 : vector<1x128xf32> to vector<8x128xf32>
    %7 = arith.addf %3, %6 : vector<8x128xf32>
    %cst_7 = arith.constant 0.000000e+00 : f32
    %8 = vector.broadcast %cst_7 : f32 to vector<8x128xf32>
    %9 = arith.maximumf %7, %8 : vector<8x128xf32>
    %10 = arith.truncf %9 : vector<8x128xf32> to vector<8x128xbf16>
    %c1 = arith.constant 1 : index
    %c0_8 = arith.constant 0 : index
    %c0_9 = arith.constant 0 : index
    %11 = vector.load %arg2[%c1, %c0_8, %c0_9] : memref<3x128x128xbf16, #tpu.memory_space<vmem>>, vector<1x128x128xbf16>
    %12 = vector.shape_cast %11 : vector<1x128x128xbf16> to vector<128x128xbf16>
    %cst_10 = arith.constant dense<0.000000e+00> : vector<8x128xf32>
    %13 = tpu.matmul %10, %12, %cst_10 {dimension_numbers = #tpu.dot_dimension_numbers<[1], [0], [0], [1], [0, 0, 1, 1], [], []>} : vector<8x128xbf16>, vector<128x128xbf16>, vector<8x128xf32> -> vector<8x128xf32>
    %c1_11 = arith.constant 1 : index
    %c0_12 = arith.constant 0 : index
    %c0_13 = arith.constant 0 : index
    %14 = vector.load %arg3[%c1_11, %c0_12, %c0_13] : memref<3x1x128xf32, #tpu.memory_space<vmem>>, vector<1x1x128xf32>
    %15 = vector.shape_cast %14 : vector<1x1x128xf32> to vector<1x128xf32>
    %16 = vector.broadcast %15 : vector<1x128xf32> to vector<8x128xf32>
    %17 = arith.addf %13, %16 : vector<8x128xf32>
    %cst_14 = arith.constant 0.000000e+00 : f32
    %18 = vector.broadcast %cst_14 : f32 to vector<8x128xf32>
    %19 = arith.maximumf %17, %18 : vector<8x128xf32>
    %20 = arith.truncf %19 : vector<8x128xf32> to vector<8x128xbf16>
    %c2 = arith.constant 2 : index
    %c0_15 = arith.constant 0 : index
    %c0_16 = arith.constant 0 : index
    %21 = vector.load %arg2[%c2, %c0_15, %c0_16] : memref<3x128x128xbf16, #tpu.memory_space<vmem>>, vector<1x128x128xbf16>
    %22 = vector.shape_cast %21 : vector<1x128x128xbf16> to vector<128x128xbf16>
    %cst_17 = arith.constant dense<0.000000e+00> : vector<8x128xf32>
    %23 = tpu.matmul %20, %22, %cst_17 {dimension_numbers = #tpu.dot_dimension_numbers<[1], [0], [0], [1], [0, 0, 1, 1], [], []>} : vector<8x128xbf16>, vector<128x128xbf16>, vector<8x128xf32> -> vector<8x128xf32>
    %c2_18 = arith.constant 2 : index
    %c0_19 = arith.constant 0 : index
    %c0_20 = arith.constant 0 : index
    %24 = vector.load %arg3[%c2_18, %c0_19, %c0_20] : memref<3x1x128xf32, #tpu.memory_space<vmem>>, vector<1x1x128xf32>
    %25 = vector.shape_cast %24 : vector<1x1x128xf32> to vector<1x128xf32>
    %26 = vector.broadcast %25 : vector<1x128xf32> to vector<8x128xf32>
    %27 = arith.addf %23, %26 : vector<8x128xf32>
    %28 = vector.extract_strided_slice %27 {offsets = [0, 0], sizes = [8, 4], strides = [1, 1]} : vector<8x128xf32> to vector<8x4xf32>
    %c0_21 = arith.constant 0 : index
    %c0_22 = arith.constant 0 : index
    %29 = vector.load %arg4[%c0_21, %c0_22] : memref<8x4xf32, #tpu.memory_space<vmem>>, vector<8x4xf32>
    tpu.vector_store %arg4[%c0_21, %c0_22], %28 {strides = array<i32>} : memref<8x4xf32, #tpu.memory_space<vmem>>, vector<8x4xf32>,
    return
  }
  func.func @transform_0(%arg0: i32) -> (i32, i32) {
    %c0_i32 = arith.constant 0 : i32
    %c0_i32_0 = arith.constant 0 : i32
    return %arg0, %c0_i32 : i32, i32
  }
  func.func @transform_1(%arg0: i32) -> (i32, i32, i32) {
    %c0_i32 = arith.constant 0 : i32
    %c0_i32_0 = arith.constant 0 : i32
    %c0_i32_1 = arith.constant 0 : i32
    %c0_i32_2 = arith.constant 0 : i32
    return %c0_i32, %c0_i32_0, %c0_i32_1 : i32, i32, i32
  }
  func.func @transform_2(%arg0: i32) -> (i32, i32, i32) {
    %c0_i32 = arith.constant 0 : i32
    %c0_i32_0 = arith.constant 0 : i32
    %c0_i32_1 = arith.constant 0 : i32
    %c0_i32_2 = arith.constant 0 : i32
    return %c0_i32, %c0_i32_0, %c0_i32_1 : i32, i32, i32
  }
  func.func @transform_3(%arg0: i32) -> (i32, i32) {
    %c0_i32 = arith.constant 0 : i32
    %c0_i32_0 = arith.constant 0 : i32
    return %arg0, %c0_i32 : i32, i32
  }
}

</mosaic_0001>

<llo_original>
// kernel: dqn_forward.1
$region0: #{dqn_forward.1}
  #allocation0 [shape = 'u32[]', space=smem, size = 0x4, offset = 0x4, fixed_abs, tag = 'smem constant byte address 0x4 - core index']
  #allocation1 [shape = 'u32[72,128]{1,0:T(1,128)}', space=vmem, size = 0x9000, scoped, tag = 'internal scratch']
  %s0 = inlined_call_operand.vmem [shape: bf16[8,16], index: 0, kind: input, shape index: {}]
  %s1 = inlined_call_operand.hbm [shape: bf16[3,128,128], index: 1, kind: input, shape index: {}]
  %s2 = inlined_call_operand.vmem [shape: f32[3,1,128], index: 2, kind: input, shape index: {}]
  %s3 = inlined_call_operand.vmem [shape: f32[8,4], index: 3, kind: output, shape index: {}]
  %s4 = sld [smem:[#allocation0]]
  $region26: #{dqn_forward.1} parent=0
    _
  %s6 = ssub.s32 1, %s4
  %s7 = scalar_select 0, %s6, %s4
  $region1: #{dqn_forward.1} parent=0
    #allocation2 [shape = 'u8[98304]{0}', space=vmem, size = 0x18000, scoped, tag = 'input window, operand 1, single buffered']
    #allocation3 [shape = 's32[1]{0}', space=sflag, size = 0x4, scoped, tag = 'scoped memory for dqn_forward.1']
    %8 = vsyncpa [#allocation3], 0
    // Predicated region
    $region2: #{dqn_forward.1} parent=1 // pred_check
      _
    $region3: #{dqn_forward.1} parent=1 // pred_check_branch
      %10 = sbr.rel (0) target = $region5
    $region4: #{dqn_forward.1} parent=1 // pred_region
      _
    $region5: #{dqn_forward.1} parent=1 // pred_fallthru
      _
    // Predicated region
    $region6: #{dqn_forward.1} parent=1 // pred_check
      _
    $region7: #{dqn_forward.1} parent=1 // pred_check_branch
      %12 = sbr.rel (0) target = $region9
    $region8: #{dqn_forward.1} parent=1 // pred_region
      %14 = vsyncadd [#allocation3], 0
      %s15 = sshll.u32 %s1, 4
      %s16 = int_to_ptr.hbm [resolvable:$true] %s15
      %s17 = sshll.u32 [#allocation2], 4
      %s18 = int_to_ptr.vmem [resolvable:$true] %s17
      %23 = dma.hbm_to_vmem [thread:$0]  %s16, 3072, %s18, [#allocation3], 64, 64, 4
    $region9: #{dqn_forward.1} parent=1 // pred_fallthru
      _
    // Predicated region
    $region10: #{dqn_forward.1} parent=1 // pred_check
      _
    $region11: #{dqn_forward.1} parent=1 // pred_check_branch
      %25 = sbr.rel (0) target = $region13
    $region12: #{dqn_forward.1} parent=1 // pred_region
      _
    $region13: #{dqn_forward.1} parent=1 // pred_fallthru
      _
    // Predicated region
    $region14: #{dqn_forward.1} parent=1 // pred_check
      _
    $region15: #{dqn_forward.1} parent=1 // pred_check_branch
      %27 = sbr.rel (0) target = $region17
    $region16: #{dqn_forward.1} parent=1 // pred_region
      %29 = dma.done [#allocation3], 3072
    $region17: #{dqn_forward.1} parent=1 // pred_fallthru
      _
    %v31 = vld [vmem:[%s0] sm:$0xf]
    %v32 = vld [vmem:[#allocation2] sm:$0xf]
    %v33 = vld [vmem:[#allocation2 + $0x4] sm:$0xf]
    %v34 = vld [vmem:[%s2] sm:$0x1]
    %v36 = vperm.slane %v34, 0
    %v40 = vunpack.c.l.b16 %v32
    %v41 = vunpack.c.l.b16 %v33
    %v42 = vpack.c.b16 %v41, %v40
    %vm44 = vcmask 130048
    %v46 = vsel %vm44, %v31, 0
    %48 = vmatpush.bf16.msra.mxu0 0
    %49 = vmatpush.bf16.msra.mxu0 0
    %50 = vmatpush.bf16.msra.mxu0 0
    %51 = vmatpush.bf16.msra.mxu0 0
    %52 = vmatpush.bf16.msra.mxu0 0
    %53 = vmatpush.bf16.msra.mxu0 0
    %54 = vmatpush.bf16.msra.mxu0 0
    %55 = vmatpush.bf16.msra.mxu0 %v42
    %56 = vmatmul.bf16.gmra.mxu0 %v46
    %v57 = vpop.f32.mrf.mxu0
    %v58 = vadd.f32 %v36, %v57
    %v59 = vpop.f32.mrf.mxu0
    %60 = vdwg.mxu0
    %v61 = vmax.f32 %v58, 0.0
    %v62 = vpack.c.bf16 %v61, %v61
    %s63 = scalar_lea.vmem [#allocation2], 64
    %v64 = vld [vmem:[%s63] sm:$0xf]
    %v65 = vld [vmem:[%s63 + $0x4] sm:$0xf]
    %v66 = vld [vmem:[%s63 + $0x8] sm:$0xf]
    %v67 = vld [vmem:[%s63 + $0xc] sm:$0xf]
    %v68 = vld [vmem:[%s63 + $0x10] sm:$0xf]
    %v69 = vld [vmem:[%s63 + $0x14] sm:$0xf]
    %v70 = vld [vmem:[%s63 + $0x18] sm:$0xf]
    %v71 = vld [vmem:[%s63 + $0x1c] sm:$0xf]
    %v72 = vld [vmem:[%s63 + $0x20] sm:$0xf]
    %v73 = vld [vmem:[%s63 + $0x24] sm:$0xf]
    %v74 = vld [vmem:[%s63 + $0x28] sm:$0xf]
    %v75 = vld [vmem:[%s63 + $0x2c] sm:$0xf]
    %v76 = vld [vmem:[%s63 + $0x30] sm:$0xf]
    %v77 = vld [vmem:[%s63 + $0x34] sm:$0xf]
    %v78 = vld [vmem:[%s63 + $0x38] sm:$0xf]
    %v79 = vld [vmem:[%s63 + $0x3c] sm:$0xf]
    %s80 = scalar_lea.vmem %s2, 1
    %v81 = vld [vmem:[%s80] sm:$0x1]
    %v83 = vperm.slane %v81, 0
    %v101 = vunpack.c.l.b16 %v64
    %v102 = vunpack.c.l.b16 %v65
    %v103 = vunpack.c.l.b16 %v66
    %v104 = vunpack.c.l.b16 %v67
    %v105 = vunpack.c.l.b16 %v68
    %v106 = vunpack.c.l.b16 %v69
    %v107 = vunpack.c.l.b16 %v70
    %v108 = vunpack.c.l.b16 %v71
    %v109 = vunpack.c.l.b16 %v72
    %v110 = vunpack.c.l.b16 %v73
    %v111 = vunpack.c.l.b16 %v74
    %v112 = vunpack.c.l.b16 %v75
    %v113 = vunpack.c.l.b16 %v76
    %v114 = vunpack.c.l.b16 %v77
    %v115 = vunpack.c.l.b16 %v78
    %v116 = vunpack.c.l.b16 %v79
    %v117 = vpack.c.b16 %v102, %v101
    %v118 = vpack.c.b16 %v104, %v103
    %v119 = vpack.c.b16 %v106, %v105
    %v120 = vpack.c.b16 %v108, %v107
    %v121 = vpack.c.b16 %v110, %v109
    %v122 = vpack.c.b16 %v112, %v111
    %v123 = vpack.c.b16 %v114, %v113
    %v124 = vpack.c.b16 %v116, %v115
    %133 = vmatpush.bf16.msra.mxu0 %v124
    %134 = vmatpush.bf16.msra.mxu0 %v123
    %135 = vmatpush.bf16.msra.mxu0 %v122
    %136 = vmatpush.bf16.msra.mxu0 %v121
    %137 = vmatpush.bf16.msra.mxu0 %v120
    %138 = vmatpush.bf16.msra.mxu0 %v119
    %139 = vmatpush.bf16.msra.mxu0 %v118
    %140 = vmatpush.bf16.msra.mxu0 %v117
    %141 = vmatmul.bf16.gmra.mxu0 %v62
    %v142 = vpop.f32.mrf.mxu0
    %v143 = vadd.f32 %v83, %v142
    %v144 = vpop.f32.mrf.mxu0
    %145 = vdwg.mxu0
    %v146 = vmax.f32 %v143, 0.0
    %v147 = vpack.c.bf16 %v146, %v146
    %s148 = scalar_lea.vmem [#allocation2], 128
    %v149 = vld [vmem:[%s148] sm:$0xf]
    %v150 = vld [vmem:[%s148 + $0x4] sm:$0xf]
    %v151 = vld [vmem:[%s148 + $0x8] sm:$0xf]
    %v152 = vld [vmem:[%s148 + $0xc] sm:$0xf]
    %v153 = vld [vmem:[%s148 + $0x10] sm:$0xf]
    %v154 = vld [vmem:[%s148 + $0x14] sm:$0xf]
    %v155 = vld [vmem:[%s148 + $0x18] sm:$0xf]
    %v156 = vld [vmem:[%s148 + $0x1c] sm:$0xf]
    %v157 = vld [vmem:[%s148 + $0x20] sm:$0xf]
    %v158 = vld [vmem:[%s148 + $0x24] sm:$0xf]
    %v159 = vld [vmem:[%s148 + $0x28] sm:$0xf]
    %v160 = vld [vmem:[%s148 + $0x2c] sm:$0xf]
    %v161 = vld [vmem:[%s148 + $0x30] sm:$0xf]
    %v162 = vld [vmem:[%s148 + $0x34] sm:$0xf]
    %v163 = vld [vmem:[%s148 + $0x38] sm:$0xf]
    %v164 = vld [vmem:[%s148 + $0x3c] sm:$0xf]
    %s165 = scalar_lea.vmem %s2, 2
    %v166 = vld [vmem:[%s165] sm:$0x1]
    %v168 = vperm.slane %v166, 0
    %v186 = vunpack.c.l.b16 %v149
    %v187 = vunpack.c.l.b16 %v150
    %v188 = vunpack.c.l.b16 %v151
    %v189 = vunpack.c.l.b16 %v152
    %v190 = vunpack.c.l.b16 %v153
    %v191 = vunpack.c.l.b16 %v154
    %v192 = vunpack.c.l.b16 %v155
    %v193 = vunpack.c.l.b16 %v156
    %v194 = vunpack.c.l.b16 %v157
    %v195 = vunpack.c.l.b16 %v158
    %v196 = vunpack.c.l.b16 %v159
    %v197 = vunpack.c.l.b16 %v160
    %v198 = vunpack.c.l.b16 %v161
    %v199 = vunpack.c.l.b16 %v162
    %v200 = vunpack.c.l.b16 %v163
    %v201 = vunpack.c.l.b16 %v164
    %v202 = vpack.c.b16 %v187, %v186
    %v203 = vpack.c.b16 %v189, %v188
    %v204 = vpack.c.b16 %v191, %v190
    %v205 = vpack.c.b16 %v193, %v192
    %v206 = vpack.c.b16 %v195, %v194
    %v207 = vpack.c.b16 %v197, %v196
    %v208 = vpack.c.b16 %v199, %v198
    %v209 = vpack.c.b16 %v201, %v200
    %218 = vmatpush.bf16.msra.mxu0 %v209
    %219 = vmatpush.bf16.msra.mxu0 %v208
    %220 = vmatpush.bf16.msra.mxu0 %v207
    %221 = vmatpush.bf16.msra.mxu0 %v206
    %222 = vmatpush.bf16.msra.mxu0 %v205
    %223 = vmatpush.bf16.msra.mxu0 %v204
    %224 = vmatpush.bf16.msra.mxu0 %v203
    %225 = vmatpush.bf16.msra.mxu0 %v202
    %226 = vmatmul.bf16.gmra.mxu0 %v147
    %v227 = vpop.f32.mrf.mxu0
    %v228 = vadd.f32 %v168, %v227
    %v229 = vpop.f32.mrf.mxu0
    %230 = vdwg.mxu0
    %vm231 = vcmask 31744
    %232 = vst.msk [vmem:[%s3] sm:$0xff] %vm231, %v228
    // Predicated region
    $region18: #{dqn_forward.1} parent=1 // pred_check
      _
    $region19: #{dqn_forward.1} parent=1 // pred_check_branch
      %234 = sbr.rel (0) target = $region21
    $region20: #{dqn_forward.1} parent=1 // pred_region
      _
    $region21: #{dqn_forward.1} parent=1 // pred_fallthru
      _
    // Predicated region
    $region22: #{dqn_forward.1} parent=1 // pred_check
      _
    $region23: #{dqn_forward.1} parent=1 // pred_check_branch
      %236 = sbr.rel (0) target = $region25
    $region24: #{dqn_forward.1} parent=1 // pred_region
      _
    $region25: #{dqn_forward.1} parent=1 // pred_fallthru
      _
    %237 = vsyncpa [#allocation3], 1

</llo_original>
